<compile_context>
chip_gen: v7x
topology: tpu7x:2x2x1
jax: 0.10.0
libtpu: 0.0.40
codegen_flags: <defaults>
</compile_context>

<pallas_src>
import functools

import jax
import jax.numpy as jnp
from jax.experimental import pallas as pl
from jax.experimental.pallas import tpu as pltpu

_MINUS = -100.0


# ----------------------------- kernels ------------------------------------ #

def _plain_kernel(x_ref, o_ref, *, K):
    # x_ref: (TB, L, H)   o_ref: (TB, out_L, H)     L = out_L * K
    x = x_ref[...]
    TB, L, H = x.shape
    out_L = L // K
    # Leading-dim-only regroup (no relayout of the minor (.., H) dims), then a
    # single sublane reduction over the window axis and one wide store.
    xw = x.reshape(TB * out_L, K, H)
    o_ref[...] = jnp.max(xw, axis=1).reshape(TB, out_L, H)


def _masked_kernel(x_ref, m_ref, o_ref, *, K, S):
    # x_ref: (TB, L, H)   m_ref: (TB, L) int32 segment ids in [0, S]
    # o_ref: (TB, out_L, S, H)
    x = x_ref[...]
    mids = m_ref[...]
    TB, L, H = x.shape
    out_L = L // K

    # One-hot built in-kernel: segment s (0-based) <-> mask id s+1, id 0 hits
    # no segment (faithful to the frozen [zeros; identity] embedding).
    seg_ids = jax.lax.broadcasted_iota(jnp.int32, (1, 1, S, 1), 2) + 1
    segf = (mids[:, :, None, None] == seg_ids).astype(x.dtype)     # (TB, L, S, 1)

    # Faithful PyTorch arithmetic: x + (-100) * (1 - onehot), vectorized over
    # all segments at once (no per-segment unrolled loop / broadcasts).
    xm = x[:, :, None, :] + _MINUS * (1.0 - segf)                  # (TB, L, S, H)

    # Window reduction + single wide store.
    xw = xm.reshape(TB * out_L, K, S, H)
    res = jnp.max(xw, axis=1)                                      # (TB*out_L, S, H)
    o_ref[...] = res.reshape(TB, out_L, S, H).astype(o_ref.dtype)


# ----------------------------- tiling helper ------------------------------- #

def _batch_tile(B, per_row_bytes, budget=4 << 20):
    """Batch rows per grid step.

    Returns either B (full extent) or a multiple of 8, so the second-to-last
    dim of every block (notably the (TB, L) int32 mask block) satisfies the
    (8, 128) / full-extent rule.  Budget ~4 MiB/tile keeps double-buffered
    blocks comfortably inside v7x's 32 MiB scoped-VMEM default.
    """
    tb = budget // max(int(per_row_bytes), 1)
    if tb >= B or B < 8:
        return B
    return min(B, max(8, (tb // 8) * 8))


# ----------------------------- module wrapper ------------------------------ #

class MaxPool:
    """JAX/Pallas re-implementation of the PyTorch MaxPool module."""

    def __init__(self, kernel_size, segment_num=None):
        self.kernel_size = kernel_size
        self.segment_num = segment_num
        if segment_num is not None:
            # nn.Embedding(segment_num + 1, segment_num), frozen to [zeros; identity]
            # (kept for the pure-JAX reference; the kernel builds it from int ids).
            self.mask_embedding = jnp.concatenate(
                [jnp.zeros((1, segment_num), jnp.float32),
                 jnp.eye(segment_num, dtype=jnp.float32)], axis=0)

    # -- unmasked / segment_num in {None, 1} path --
    def _plain_pool(self, x):
        B, L, H = x.shape
        K = self.kernel_size
        out_L = L // K
        L_use = out_L * K
        x = x[:, :L_use]                                  # MaxPool1d floor-truncation
        itemsize = jnp.dtype(x.dtype).itemsize
        TB = _batch_tile(B, per_row_bytes=L_use * H * itemsize * 3)
        out = pl.pallas_call(
            functools.partial(_plain_kernel, K=K),
            out_shape=jax.ShapeDtypeStruct((B, out_L, H), x.dtype),
            grid=(pl.cdiv(B, TB),),
            in_specs=[pl.BlockSpec((TB, L_use, H), lambda b: (b, 0, 0))],
            out_specs=pl.BlockSpec((TB, out_L, H), lambda b: (b, 0, 0)),
            compiler_params=pltpu.CompilerParams(
                dimension_semantics=("parallel",)),
        )(x)
        if out_L == 1:                                    # torch .squeeze(-1); pure reshape
            return out.reshape(B, H)
        return jnp.transpose(out, (0, 2, 1))              # (B, H, out_L)

    # -- masked / piecewise path --
    def _piecewise_pool(self, x, mask):
        B, L, H = x.shape
        K = self.kernel_size
        S = self.segment_num
        out_L = L // K
        L_use = out_L * K
        x = x[:, :L_use]
        mask = mask[:, :L_use].astype(jnp.int32)          # raw ids; no host one-hot
        itemsize = jnp.dtype(x.dtype).itemsize
        TB = _batch_tile(B, per_row_bytes=L_use * H * itemsize * (3 + S))
        out = pl.pallas_call(
            functools.partial(_masked_kernel, K=K, S=S),
            out_shape=jax.ShapeDtypeStruct((B, out_L, S, H), x.dtype),
            grid=(pl.cdiv(B, TB),),
            in_specs=[
                pl.BlockSpec((TB, L_use, H), lambda b: (b, 0, 0)),
                pl.BlockSpec((TB, L_use), lambda b: (b, 0)),
            ],
            out_specs=pl.BlockSpec((TB, out_L, S, H), lambda b: (b, 0, 0, 0)),
            compiler_params=pltpu.CompilerParams(
                dimension_semantics=("parallel",)),
        )(x, mask)
        # (B, out_L, S, H) -> (B, S*H, out_L)  == torch.cat([pool1..poolS], 1)
        # For the typical out_L == 1 case this transpose is effectively a reshape.
        return jnp.transpose(out, (0, 2, 3, 1)).reshape(B, S * H, out_L)

    def __call__(self, x, mask=None):
        if mask is None or self.segment_num is None or self.segment_num == 1:
            return self._plain_pool(x)
        return self._piecewise_pool(x, mask)


# ----------------------------- pure-JAX reference -------------------------- #

def _ref_forward(x, mask, kernel_size, segment_num, emb):
    B, L, H = x.shape
    out_L = L // kernel_size
    xt = jnp.swapaxes(x, 1, 2)                                  # (B, H, L)

    def pool1d(z):
        return z[..., :out_L * kernel_size].reshape(B, H, out_L, kernel_size).max(-1)

    if mask is None or segment_num is None or segment_num == 1:
        p = pool1d(xt)
        return p[..., 0] if out_L == 1 else p
    m = 1.0 - jnp.swapaxes(jnp.take(emb, mask, axis=0), 1, 2)   # (B, S, L)
    pools = [pool1d(xt + _MINUS * m[:, s:s + 1, :]) for s in range(segment_num)]
    return jnp.concatenate(pools, axis=1)


# ----------------------------- demo ---------------------------------------- #

if __name__ == "__main__":
    B, L, H = 2, 16, 32          # batch, seq_len, hidden
    segment_num = 3

    key = jax.random.PRNGKey(0)
    kx, km = jax.random.split(key)
    x = jax.random.normal(kx, (B, L, H), dtype=jnp.float32)
    mask = jax.random.randint(km, (B, L), 0, segment_num + 1, dtype=jnp.int32)

    # masked (piecewise) path, pool over full sequence (typical use, out_L == 1)
    mod_pcnn = MaxPool(L, segment_num=segment_num)
    out_pcnn = jax.block_until_ready(mod_pcnn(x, mask))
    ref_pcnn = _ref_forward(x, mask, L, segment_num, mod_pcnn.mask_embedding)
    assert out_pcnn.shape == (B, segment_num * H, 1)
    assert jnp.allclose(out_pcnn, ref_pcnn, atol=1e-5, rtol=1e-5)

    # masked path, multiple output positions (out_L > 1)
    mod_pcnn2 = MaxPool(4, segment_num=segment_num)
    out_pcnn2 = jax.block_until_ready(mod_pcnn2(x, mask))
    ref_pcnn2 = _ref_forward(x, mask, 4, segment_num, mod_pcnn2.mask_embedding)
    assert out_pcnn2.shape == (B, segment_num * H, L // 4)
    assert jnp.allclose(out_pcnn2, ref_pcnn2, atol=1e-5, rtol=1e-5)

    # plain path (no mask), out_L == 1
    mod_plain = MaxPool(L)
    out_plain = jax.block_until_ready(mod_plain(x))
    ref_plain = _ref_forward(x, None, L, None, None)
    assert out_plain.shape == (B, H)
    assert jnp.allclose(out_plain, ref_plain, atol=1e-5, rtol=1e-5)

    # plain path, out_L > 1
    mod_plain2 = MaxPool(4)
    out_plain2 = jax.block_until_ready(mod_plain2(x))
    ref_plain2 = _ref_forward(x, None, 4, None, None)
    assert out_plain2.shape == (B, H, L // 4)
    assert jnp.allclose(out_plain2, ref_plain2, atol=1e-5, rtol=1e-5)

    print("KERNEL_OK")
</pallas_src>

<mosaic_0001>
module attributes {stable_mosaic.version = 11 : i64} {
  func.func @_masked_kernel(%arg0: i32, %arg1: memref<2x16x32xf32, #tpu.memory_space<vmem>>, %arg2: memref<2x16xi32, #tpu.memory_space<vmem>>, %arg3: memref<2x1x3x32xf32, #tpu.memory_space<vmem>>) attributes {dimension_semantics = [#tpu.dimension_semantics<parallel>], iteration_bounds = array<i64: 1>, scalar_prefetch = 0 : i64, scratch_operands = 0 : i64, tpu.core_type = #tpu.core_type<tc>, window_params = [{transform_indices = @transform_0, window_bounds = array<i64: 2, 16, 32>}, {transform_indices = @transform_1, window_bounds = array<i64: 2, 16>}, {transform_indices = @transform_2, window_bounds = array<i64: 2, 1, 3, 32>}]} {
    %c0 = arith.constant 0 : index
    %c0_0 = arith.constant 0 : index
    %c0_1 = arith.constant 0 : index
    %0 = vector.load %arg1[%c0, %c0_0, %c0_1] : memref<2x16x32xf32, #tpu.memory_space<vmem>>, vector<2x16x32xf32>
    %c0_2 = arith.constant 0 : index
    %c0_3 = arith.constant 0 : index
    %1 = vector.load %arg2[%c0_2, %c0_3] : memref<2x16xi32, #tpu.memory_space<vmem>>, vector<2x16xi32>
    %2 = tpu.iota {dimensions = array<i32: 2>} : vector<1x1x3x1xi32>
    %c1_i32 = arith.constant 1 : i32
    %3 = vector.broadcast %c1_i32 : i32 to vector<1x1x3x1xi32>
    %4 = arith.addi %2, %3 : vector<1x1x3x1xi32>
    %5 = vector.shape_cast %1 : vector<2x16xi32> to vector<2x16x1x1xi32>
    %6 = vector.broadcast %5 : vector<2x16x1x1xi32> to vector<2x16x3x1xi32>
    %7 = vector.broadcast %4 : vector<1x1x3x1xi32> to vector<2x16x3x1xi32>
    %8 = arith.cmpi eq, %6, %7 : vector<2x16x3x1xi32>
    %9 = arith.extui %8 : vector<2x16x3x1xi1> to vector<2x16x3x1xi32>
    %10 = arith.sitofp %9 : vector<2x16x3x1xi32> to vector<2x16x3x1xf32>
    %11 = vector.shape_cast %0 : vector<2x16x32xf32> to vector<2x16x1x32xf32>
    %cst = arith.constant 1.000000e+00 : f32
    %12 = vector.broadcast %cst : f32 to vector<2x16x3x1xf32>
    %13 = arith.subf %12, %10 : vector<2x16x3x1xf32>
    %cst_4 = arith.constant -1.000000e+02 : f32
    %14 = vector.broadcast %cst_4 : f32 to vector<2x16x3x1xf32>
    %15 = arith.mulf %14, %13 : vector<2x16x3x1xf32>
    %16 = vector.broadcast %11 : vector<2x16x1x32xf32> to vector<2x16x3x32xf32>
    %17 = vector.broadcast %15 : vector<2x16x3x1xf32> to vector<2x16x3x32xf32>
    %18 = arith.addf %16, %17 : vector<2x16x3x32xf32>
    %cst_5 = arith.constant dense<0xFF800000> : vector<2x3x32xf32>
    %19 = vector.multi_reduction <maximumf>, %18, %cst_5 [1] : vector<2x16x3x32xf32> to vector<2x3x32xf32>
    %20 = vector.shape_cast %19 : vector<2x3x32xf32> to vector<2x1x3x32xf32>
    %c0_6 = arith.constant 0 : index
    %c0_7 = arith.constant 0 : index
    %c0_8 = arith.constant 0 : index
    %c0_9 = arith.constant 0 : index
    %21 = vector.load %arg3[%c0_6, %c0_7, %c0_8, %c0_9] : memref<2x1x3x32xf32, #tpu.memory_space<vmem>>, vector<2x1x3x32xf32>
    tpu.vector_store %arg3[%c0_6, %c0_7, %c0_8, %c0_9], %20 {strides = array<i32>} : memref<2x1x3x32xf32, #tpu.memory_space<vmem>>, vector<2x1x3x32xf32>,
    return
  }
  func.func @transform_0(%arg0: i32) -> (i32, i32, i32) {
    %c0_i32 = arith.constant 0 : i32
    %c0_i32_0 = arith.constant 0 : i32
    %c0_i32_1 = arith.constant 0 : i32
    return %arg0, %c0_i32, %c0_i32_0 : i32, i32, i32
  }
  func.func @transform_1(%arg0: i32) -> (i32, i32) {
    %c0_i32 = arith.constant 0 : i32
    %c0_i32_0 = arith.constant 0 : i32
    return %arg0, %c0_i32 : i32, i32
  }
  func.func @transform_2(%arg0: i32) -> (i32, i32, i32, i32) {
    %c0_i32 = arith.constant 0 : i32
    %c0_i32_0 = arith.constant 0 : i32
    %c0_i32_1 = arith.constant 0 : i32
    %c0_i32_2 = arith.constant 0 : i32
    return %arg0, %c0_i32, %c0_i32_0, %c0_i32_1 : i32, i32, i32, i32
  }
}

</mosaic_0001>

<llo_original>
// kernel: tpu_custom_call.1
$region0: #{tpu_custom_call.1}
  #allocation0 [shape = 'u32[]', space=smem, size = 0x4, offset = 0x4, fixed_abs, tag = 'smem constant byte address 0x4 - core index']
  #allocation1 [shape = 'u32[144,128]{1,0:T(1,128)}', space=vmem, size = 0x12000, scoped, tag = 'internal scratch']
  %s0 = inlined_call_operand.hbm [shape: f32[2,16,32], index: 0, kind: input, shape index: {}]
  %s1 = inlined_call_operand.vmem [shape: s32[2,16], index: 1, kind: input, shape index: {}]
  %s2 = inlined_call_operand.vmem [shape: f32[2,1,3,32], index: 2, kind: output, shape index: {}]
  %s3 = sld [smem:[#allocation0]]
  $region22: #{tpu_custom_call.1} parent=0
    _
  %s5 = ssub.s32 1, %s3
  %s6 = scalar_select 0, %s5, %s3
  $region1: #{tpu_custom_call.1} parent=0
    #allocation2 [shape = 'u8[16384]{0}', space=vmem, size = 0x4000, scoped, tag = 'input window, operand 0, single buffered']
    #allocation3 [shape = 's32[1]{0}', space=sflag, size = 0x4, scoped, tag = 'scoped memory for tpu_custom_call.1']
    %7 = vsyncpa [#allocation3], 0
    // Predicated region
    $region2: #{tpu_custom_call.1} parent=1 // pred_check
      _
    $region3: #{tpu_custom_call.1} parent=1 // pred_check_branch
      %9 = sbr.rel (0) target = $region5
    $region4: #{tpu_custom_call.1} parent=1 // pred_region
      %s11 = ssub.s32 512, 512
      %12 = vsyncadd [#allocation3], %s11
      %s13 = sshll.u32 [#allocation2], 4
      %s14 = int_to_ptr.vmem [resolvable:$true] %s13
      %19 = dma.hbm_to_vmem [thread:$0]  %s0, 512, %s14, [#allocation3], 128, 128, 8
    $region5: #{tpu_custom_call.1} parent=1 // pred_fallthru
      _
    // Predicated region
    $region6: #{tpu_custom_call.1} parent=1 // pred_check
      _
    $region7: #{tpu_custom_call.1} parent=1 // pred_check_branch
      %21 = sbr.rel (0) target = $region9
    $region8: #{tpu_custom_call.1} parent=1 // pred_region
      _
    $region9: #{tpu_custom_call.1} parent=1 // pred_fallthru
      _
    // Predicated region
    $region10: #{tpu_custom_call.1} parent=1 // pred_check
      _
    $region11: #{tpu_custom_call.1} parent=1 // pred_check_branch
      %23 = sbr.rel (0) target = $region13
    $region12: #{tpu_custom_call.1} parent=1 // pred_region
      %24 = dma.done [#allocation3], 512
    $region13: #{tpu_custom_call.1} parent=1 // pred_fallthru
      _
    %v25 = vld [vmem:[#allocation2] sm:$0xff]
    %v26 = vld [vmem:[#allocation2 + $0x8] sm:$0xff]
    %v27 = vld [vmem:[#allocation2 + $0x10] sm:$0xff]
    %v28 = vld [vmem:[#allocation2 + $0x18] sm:$0xff]
    %v29 = vld [vmem:[%s1] sm:$0x3]
    %v30 = vlaneseq
    %v31 = vshrl.u32 %v30, 7
    %v32 = vadd.s32 %v31, 1
    %v33 = vlaneseq
    %v34 = vshrl.u32 %v33, 7
    %v35 = vsub.s32 0, %v34
    %v36 = vrot.slane %v29, %v35
    %38 = vbcast.lane.b32.xlu0 %v36, 256
    %v39 = vpop.permute.xlu0 %38
    %s41 = sor.u32 256, 8
    %42 = vbcast.lane.b32.xlu0 %v36, %s41
    %v43 = vpop.permute.xlu0 %42
    %v44 = vlaneseq
    %v45 = vshrl.u32 %v44, 7
    %v46 = vsub.s32 1, %v45
    %v47 = vrot.slane %v29, %v46
    %49 = vbcast.lane.b32.xlu0 %v47, 256
    %v50 = vpop.permute.xlu0 %49
    %s52 = sor.u32 256, 8
    %53 = vbcast.lane.b32.xlu0 %v47, %s52
    %v54 = vpop.permute.xlu0 %53
    %v55 = vlaneseq
    %v56 = vshrl.u32 %v55, 7
    %v57 = vsub.s32 0, %v56
    %v58 = vrot.slane %v39, %v57
    %v59 = vlaneseq
    %v60 = vshrl.u32 %v59, 7
    %v61 = vsub.s32 1, %v60
    %v62 = vrot.slane %v39, %v61
    %v63 = vlaneseq
    %v64 = vshrl.u32 %v63, 7
    %v65 = vsub.s32 2, %v64
    %v66 = vrot.slane %v39, %v65
    %v67 = vlaneseq
    %v68 = vshrl.u32 %v67, 7
    %v69 = vsub.s32 3, %v68
    %v70 = vrot.slane %v39, %v69
    %v71 = vlaneseq
    %v72 = vshrl.u32 %v71, 7
    %v73 = vsub.s32 4, %v72
    %v74 = vrot.slane %v39, %v73
    %v75 = vlaneseq
    %v76 = vshrl.u32 %v75, 7
    %v77 = vsub.s32 5, %v76
    %v78 = vrot.slane %v39, %v77
    %v79 = vlaneseq
    %v80 = vshrl.u32 %v79, 7
    %v81 = vsub.s32 6, %v80
    %v82 = vrot.slane %v39, %v81
    %v83 = vlaneseq
    %v84 = vshrl.u32 %v83, 7
    %v85 = vsub.s32 7, %v84
    %v86 = vrot.slane %v39, %v85
    %v87 = vlaneseq
    %v88 = vshrl.u32 %v87, 7
    %v89 = vsub.s32 0, %v88
    %v90 = vrot.slane %v43, %v89
    %v91 = vlaneseq
    %v92 = vshrl.u32 %v91, 7
    %v93 = vsub.s32 1, %v92
    %v94 = vrot.slane %v43, %v93
    %v95 = vlaneseq
    %v96 = vshrl.u32 %v95, 7
    %v97 = vsub.s32 2, %v96
    %v98 = vrot.slane %v43, %v97
    %v99 = vlaneseq
    %v100 = vshrl.u32 %v99, 7
    %v101 = vsub.s32 3, %v100
    %v102 = vrot.slane %v43, %v101
    %v103 = vlaneseq
    %v104 = vshrl.u32 %v103, 7
    %v105 = vsub.s32 4, %v104
    %v106 = vrot.slane %v43, %v105
    %v107 = vlaneseq
    %v108 = vshrl.u32 %v107, 7
    %v109 = vsub.s32 5, %v108
    %v110 = vrot.slane %v43, %v109
    %v111 = vlaneseq
    %v112 = vshrl.u32 %v111, 7
    %v113 = vsub.s32 6, %v112
    %v114 = vrot.slane %v43, %v113
    %v115 = vlaneseq
    %v116 = vshrl.u32 %v115, 7
    %v117 = vsub.s32 7, %v116
    %v118 = vrot.slane %v43, %v117
    %v119 = vlaneseq
    %v120 = vshrl.u32 %v119, 7
    %v121 = vsub.s32 0, %v120
    %v122 = vrot.slane %v50, %v121
    %v123 = vlaneseq
    %v124 = vshrl.u32 %v123, 7
    %v125 = vsub.s32 1, %v124
    %v126 = vrot.slane %v50, %v125
    %v127 = vlaneseq
    %v128 = vshrl.u32 %v127, 7
    %v129 = vsub.s32 2, %v128
    %v130 = vrot.slane %v50, %v129
    %v131 = vlaneseq
    %v132 = vshrl.u32 %v131, 7
    %v133 = vsub.s32 3, %v132
    %v134 = vrot.slane %v50, %v133
    %v135 = vlaneseq
    %v136 = vshrl.u32 %v135, 7
    %v137 = vsub.s32 4, %v136
    %v138 = vrot.slane %v50, %v137
    %v139 = vlaneseq
    %v140 = vshrl.u32 %v139, 7
    %v141 = vsub.s32 5, %v140
    %v142 = vrot.slane %v50, %v141
    %v143 = vlaneseq
    %v144 = vshrl.u32 %v143, 7
    %v145 = vsub.s32 6, %v144
    %v146 = vrot.slane %v50, %v145
    %v147 = vlaneseq
    %v148 = vshrl.u32 %v147, 7
    %v149 = vsub.s32 7, %v148
    %v150 = vrot.slane %v50, %v149
    %v151 = vlaneseq
    %v152 = vshrl.u32 %v151, 7
    %v153 = vsub.s32 0, %v152
    %v154 = vrot.slane %v54, %v153
    %v155 = vlaneseq
    %v156 = vshrl.u32 %v155, 7
    %v157 = vsub.s32 1, %v156
    %v158 = vrot.slane %v54, %v157
    %v159 = vlaneseq
    %v160 = vshrl.u32 %v159, 7
    %v161 = vsub.s32 2, %v160
    %v162 = vrot.slane %v54, %v161
    %v163 = vlaneseq
    %v164 = vshrl.u32 %v163, 7
    %v165 = vsub.s32 3, %v164
    %v166 = vrot.slane %v54, %v165
    %v167 = vlaneseq
    %v168 = vshrl.u32 %v167, 7
    %v169 = vsub.s32 4, %v168
    %v170 = vrot.slane %v54, %v169
    %v171 = vlaneseq
    %v172 = vshrl.u32 %v171, 7
    %v173 = vsub.s32 5, %v172
    %v174 = vrot.slane %v54, %v173
    %v175 = vlaneseq
    %v176 = vshrl.u32 %v175, 7
    %v177 = vsub.s32 6, %v176
    %v178 = vrot.slane %v54, %v177
    %v179 = vlaneseq
    %v180 = vshrl.u32 %v179, 7
    %v181 = vsub.s32 7, %v180
    %v182 = vrot.slane %v54, %v181
    %vm183 = vcmp.eq.s32.totalorder %v58, %v32
    %vm184 = vcmp.eq.s32.totalorder %v62, %v32
    %vm185 = vcmp.eq.s32.totalorder %v66, %v32
    %vm186 = vcmp.eq.s32.totalorder %v70, %v32
    %vm187 = vcmp.eq.s32.totalorder %v74, %v32
    %vm188 = vcmp.eq.s32.totalorder %v78, %v32
    %vm189 = vcmp.eq.s32.totalorder %v82, %v32
    %vm190 = vcmp.eq.s32.totalorder %v86, %v32
    %vm191 = vcmp.eq.s32.totalorder %v90, %v32
    %vm192 = vcmp.eq.s32.totalorder %v94, %v32
    %vm193 = vcmp.eq.s32.totalorder %v98, %v32
    %vm194 = vcmp.eq.s32.totalorder %v102, %v32
    %vm195 = vcmp.eq.s32.totalorder %v106, %v32
    %vm196 = vcmp.eq.s32.totalorder %v110, %v32
    %vm197 = vcmp.eq.s32.totalorder %v114, %v32
    %vm198 = vcmp.eq.s32.totalorder %v118, %v32
    %vm199 = vcmp.eq.s32.totalorder %v122, %v32
    %vm200 = vcmp.eq.s32.totalorder %v126, %v32
    %vm201 = vcmp.eq.s32.totalorder %v130, %v32
    %vm202 = vcmp.eq.s32.totalorder %v134, %v32
    %vm203 = vcmp.eq.s32.totalorder %v138, %v32
    %vm204 = vcmp.eq.s32.totalorder %v142, %v32
    %vm205 = vcmp.eq.s32.totalorder %v146, %v32
    %vm206 = vcmp.eq.s32.totalorder %v150, %v32
    %vm207 = vcmp.eq.s32.totalorder %v154, %v32
    %vm208 = vcmp.eq.s32.totalorder %v158, %v32
    %vm209 = vcmp.eq.s32.totalorder %v162, %v32
    %vm210 = vcmp.eq.s32.totalorder %v166, %v32
    %vm211 = vcmp.eq.s32.totalorder %v170, %v32
    %vm212 = vcmp.eq.s32.totalorder %v174, %v32
    %vm213 = vcmp.eq.s32.totalorder %v178, %v32
    %vm214 = vcmp.eq.s32.totalorder %v182, %v32
    %v215 = vsel %vm183, 1, 0
    %v216 = vsel %vm184, 1, 0
    %v217 = vsel %vm185, 1, 0
    %v218 = vsel %vm186, 1, 0
    %v219 = vsel %vm187, 1, 0
    %v220 = vsel %vm188, 1, 0
    %v221 = vsel %vm189, 1, 0
    %v222 = vsel %vm190, 1, 0
    %v223 = vsel %vm191, 1, 0
    %v224 = vsel %vm192, 1, 0
    %v225 = vsel %vm193, 1, 0
    %v226 = vsel %vm194, 1, 0
    %v227 = vsel %vm195, 1, 0
    %v228 = vsel %vm196, 1, 0
    %v229 = vsel %vm197, 1, 0
    %v230 = vsel %vm198, 1, 0
    %v231 = vsel %vm199, 1, 0
    %v232 = vsel %vm200, 1, 0
    %v233 = vsel %vm201, 1, 0
    %v234 = vsel %vm202, 1, 0
    %v235 = vsel %vm203, 1, 0
    %v236 = vsel %vm204, 1, 0
    %v237 = vsel %vm205, 1, 0
    %v238 = vsel %vm206, 1, 0
    %v239 = vsel %vm207, 1, 0
    %v240 = vsel %vm208, 1, 0
    %v241 = vsel %vm209, 1, 0
    %v242 = vsel %vm210, 1, 0
    %v243 = vsel %vm211, 1, 0
    %v244 = vsel %vm212, 1, 0
    %v245 = vsel %vm213, 1, 0
    %v246 = vsel %vm214, 1, 0
    %v247 = vcvt.s32.f32 %v215
    %v248 = vcvt.s32.f32 %v216
    %v249 = vcvt.s32.f32 %v217
    %v250 = vcvt.s32.f32 %v218
    %v251 = vcvt.s32.f32 %v219
    %v252 = vcvt.s32.f32 %v220
    %v253 = vcvt.s32.f32 %v221
    %v254 = vcvt.s32.f32 %v222
    %v255 = vcvt.s32.f32 %v223
    %v256 = vcvt.s32.f32 %v224
    %v257 = vcvt.s32.f32 %v225
    %v258 = vcvt.s32.f32 %v226
    %v259 = vcvt.s32.f32 %v227
    %v260 = vcvt.s32.f32 %v228
    %v261 = vcvt.s32.f32 %v229
    %v262 = vcvt.s32.f32 %v230
    %v263 = vcvt.s32.f32 %v231
    %v264 = vcvt.s32.f32 %v232
    %v265 = vcvt.s32.f32 %v233
    %v266 = vcvt.s32.f32 %v234
    %v267 = vcvt.s32.f32 %v235
    %v268 = vcvt.s32.f32 %v236
    %v269 = vcvt.s32.f32 %v237
    %v270 = vcvt.s32.f32 %v238
    %v271 = vcvt.s32.f32 %v239
    %v272 = vcvt.s32.f32 %v240
    %v273 = vcvt.s32.f32 %v241
    %v274 = vcvt.s32.f32 %v242
    %v275 = vcvt.s32.f32 %v243
    %v276 = vcvt.s32.f32 %v244
    %v277 = vcvt.s32.f32 %v245
    %v278 = vcvt.s32.f32 %v246
    %v283 = vcombine.high %v25, %v25
    %v285 = vunpack.c.l.s4 1966171168
    %v286 = vunpack.c.0.s8 %v285
    %v287 = vlaneseq
    %v288 = vshrl.u32 %v287, 7
    %v289 = vsub.s32 %v286, %v288
    %v290 = vrot.slane %v25, %v289
    %v292 = vunpack.c.l.s4 1966171168
    %v293 = vunpack.c.0.s8 %v292
    %v294 = vlaneseq
    %v295 = vshrl.u32 %v294, 7
    %v296 = vsub.s32 %v293, %v295
    %v297 = vrot.slane %v283, %v296
    %v298 = vcombine.high %v290, %v290
    %v299 = vcombine.high %v297, %v297
    %v301 = vunpack.c.l.s4 1966171168
    %v302 = vunpack.c.0.s8 %v301
    %v303 = vlaneseq
    %v304 = vshrl.u32 %v303, 7
    %v305 = vsub.s32 %v302, %v304
    %v306 = vrot.slane %v290, %v305
    %v308 = vunpack.c.l.s4 1966171168
    %v309 = vunpack.c.0.s8 %v308
    %v310 = vlaneseq
    %v311 = vshrl.u32 %v310, 7
    %v312 = vsub.s32 %v309, %v311
    %v313 = vrot.slane %v297, %v312
    %v315 = vunpack.c.l.s4 1966171168
    %v316 = vunpack.c.0.s8 %v315
    %v317 = vlaneseq
    %v318 = vshrl.u32 %v317, 7
    %v319 = vsub.s32 %v316, %v318
    %v320 = vrot.slane %v298, %v319
    %v322 = vunpack.c.l.s4 1966171168
    %v323 = vunpack.c.0.s8 %v322
    %v324 = vlaneseq
    %v325 = vshrl.u32 %v324, 7
    %v326 = vsub.s32 %v323, %v325
    %v327 = vrot.slane %v299, %v326
    %v328 = vcombine.high %v306, %v306
    %v329 = vcombine.high %v313, %v313
    %v330 = vcombine.high %v320, %v320
    %v331 = vcombine.high %v327, %v327
    %v332 = vcombine.high %v26, %v26
    %v334 = vunpack.c.l.s4 1966171168
    %v335 = vunpack.c.0.s8 %v334
    %v336 = vlaneseq
    %v337 = vshrl.u32 %v336, 7
    %v338 = vsub.s32 %v335, %v337
    %v339 = vrot.slane %v26, %v338
    %v341 = vunpack.c.l.s4 1966171168
    %v342 = vunpack.c.0.s8 %v341
    %v343 = vlaneseq
    %v344 = vshrl.u32 %v343, 7
    %v345 = vsub.s32 %v342, %v344
    %v346 = vrot.slane %v332, %v345
    %v347 = vcombine.high %v339, %v339
    %v348 = vcombine.high %v346, %v346
    %v350 = vunpack.c.l.s4 1966171168
    %v351 = vunpack.c.0.s8 %v350
    %v352 = vlaneseq
    %v353 = vshrl.u32 %v352, 7
    %v354 = vsub.s32 %v351, %v353
    %v355 = vrot.slane %v339, %v354
    %v357 = vunpack.c.l.s4 1966171168
    %v358 = vunpack.c.0.s8 %v357
    %v359 = vlaneseq
    %v360 = vshrl.u32 %v359, 7
    %v361 = vsub.s32 %v358, %v360
    %v362 = vrot.slane %v346, %v361
    %v364 = vunpack.c.l.s4 1966171168
    %v365 = vunpack.c.0.s8 %v364
    %v366 = vlaneseq
    %v367 = vshrl.u32 %v366, 7
    %v368 = vsub.s32 %v365, %v367
    %v369 = vrot.slane %v347, %v368
    %v371 = vunpack.c.l.s4 1966171168
    %v372 = vunpack.c.0.s8 %v371
    %v373 = vlaneseq
    %v374 = vshrl.u32 %v373, 7
    %v375 = vsub.s32 %v372, %v374
    %v376 = vrot.slane %v348, %v375
    %v377 = vcombine.high %v355, %v355
    %v378 = vcombine.high %v362, %v362
    %v379 = vcombine.high %v369, %v369
    %v380 = vcombine.high %v376, %v376
    %v381 = vcombine.high %v27, %v27
    %v383 = vunpack.c.l.s4 1966171168
    %v384 = vunpack.c.0.s8 %v383
    %v385 = vlaneseq
    %v386 = vshrl.u32 %v385, 7
    %v387 = vsub.s32 %v384, %v386
    %v388 = vrot.slane %v27, %v387
    %v390 = vunpack.c.l.s4 1966171168
    %v391 = vunpack.c.0.s8 %v390
    %v392 = vlaneseq
    %v393 = vshrl.u32 %v392, 7
    %v394 = vsub.s32 %v391, %v393
    %v395 = vrot.slane %v381, %v394
    %v396 = vcombine.high %v388, %v388
    %v397 = vcombine.high %v395, %v395
    %v399 = vunpack.c.l.s4 1966171168
    %v400 = vunpack.c.0.s8 %v399
    %v401 = vlaneseq
    %v402 = vshrl.u32 %v401, 7
    %v403 = vsub.s32 %v400, %v402
    %v404 = vrot.slane %v388, %v403
    %v406 = vunpack.c.l.s4 1966171168
    %v407 = vunpack.c.0.s8 %v406
    %v408 = vlaneseq
    %v409 = vshrl.u32 %v408, 7
    %v410 = vsub.s32 %v407, %v409
    %v411 = vrot.slane %v395, %v410
    %v413 = vunpack.c.l.s4 1966171168
    %v414 = vunpack.c.0.s8 %v413
    %v415 = vlaneseq
    %v416 = vshrl.u32 %v415, 7
    %v417 = vsub.s32 %v414, %v416
    %v418 = vrot.slane %v396, %v417
    %v420 = vunpack.c.l.s4 1966171168
    %v421 = vunpack.c.0.s8 %v420
    %v422 = vlaneseq
    %v423 = vshrl.u32 %v422, 7
    %v424 = vsub.s32 %v421, %v423
    %v425 = vrot.slane %v397, %v424
    %v426 = vcombine.high %v404, %v404
    %v427 = vcombine.high %v411, %v411
    %v428 = vcombine.high %v418, %v418
    %v429 = vcombine.high %v425, %v425
    %v430 = vcombine.high %v28, %v28
    %v432 = vunpack.c.l.s4 1966171168
    %v433 = vunpack.c.0.s8 %v432
    %v434 = vlaneseq
    %v435 = vshrl.u32 %v434, 7
    %v436 = vsub.s32 %v433, %v435
    %v437 = vrot.slane %v28, %v436
    %v439 = vunpack.c.l.s4 1966171168
    %v440 = vunpack.c.0.s8 %v439
    %v441 = vlaneseq
    %v442 = vshrl.u32 %v441, 7
    %v443 = vsub.s32 %v440, %v442
    %v444 = vrot.slane %v430, %v443
    %v445 = vcombine.high %v437, %v437
    %v446 = vcombine.high %v444, %v444
    %v448 = vunpack.c.l.s4 1966171168
    %v449 = vunpack.c.0.s8 %v448
    %v450 = vlaneseq
    %v451 = vshrl.u32 %v450, 7
    %v452 = vsub.s32 %v449, %v451
    %v453 = vrot.slane %v437, %v452
    %v455 = vunpack.c.l.s4 1966171168
    %v456 = vunpack.c.0.s8 %v455
    %v457 = vlaneseq
    %v458 = vshrl.u32 %v457, 7
    %v459 = vsub.s32 %v456, %v458
    %v460 = vrot.slane %v444, %v459
    %v462 = vunpack.c.l.s4 1966171168
    %v463 = vunpack.c.0.s8 %v462
    %v464 = vlaneseq
    %v465 = vshrl.u32 %v464, 7
    %v466 = vsub.s32 %v463, %v465
    %v467 = vrot.slane %v445, %v466
    %v469 = vunpack.c.l.s4 1966171168
    %v470 = vunpack.c.0.s8 %v469
    %v471 = vlaneseq
    %v472 = vshrl.u32 %v471, 7
    %v473 = vsub.s32 %v470, %v472
    %v474 = vrot.slane %v446, %v473
    %v475 = vcombine.high %v453, %v453
    %v476 = vcombine.high %v460, %v460
    %v477 = vcombine.high %v467, %v467
    %v478 = vcombine.high %v474, %v474
    %v479 = vsub.f32 1.0, %v247
    %v480 = vsub.f32 1.0, %v248
    %v481 = vsub.f32 1.0, %v249
    %v482 = vsub.f32 1.0, %v250
    %v483 = vsub.f32 1.0, %v251
    %v484 = vsub.f32 1.0, %v252
    %v485 = vsub.f32 1.0, %v253
    %v486 = vsub.f32 1.0, %v254
    %v487 = vsub.f32 1.0, %v255
    %v488 = vsub.f32 1.0, %v256
    %v489 = vsub.f32 1.0, %v257
    %v490 = vsub.f32 1.0, %v258
    %v491 = vsub.f32 1.0, %v259
    %v492 = vsub.f32 1.0, %v260
    %v493 = vsub.f32 1.0, %v261
    %v494 = vsub.f32 1.0, %v262
    %v495 = vsub.f32 1.0, %v263
    %v496 = vsub.f32 1.0, %v264
    %v497 = vsub.f32 1.0, %v265
    %v498 = vsub.f32 1.0, %v266
    %v499 = vsub.f32 1.0, %v267
    %v500 = vsub.f32 1.0, %v268
    %v501 = vsub.f32 1.0, %v269
    %v502 = vsub.f32 1.0, %v270
    %v503 = vsub.f32 1.0, %v271
    %v504 = vsub.f32 1.0, %v272
    %v505 = vsub.f32 1.0, %v273
    %v506 = vsub.f32 1.0, %v274
    %v507 = vsub.f32 1.0, %v275
    %v508 = vsub.f32 1.0, %v276
    %v509 = vsub.f32 1.0, %v277
    %v510 = vsub.f32 1.0, %v278
    %v511 = vmul.f32 %v479, -100.0
    %v512 = vmul.f32 %v480, -100.0
    %v513 = vmul.f32 %v481, -100.0
    %v514 = vmul.f32 %v482, -100.0
    %v515 = vmul.f32 %v483, -100.0
    %v516 = vmul.f32 %v484, -100.0
    %v517 = vmul.f32 %v485, -100.0
    %v518 = vmul.f32 %v486, -100.0
    %v519 = vmul.f32 %v487, -100.0
    %v520 = vmul.f32 %v488, -100.0
    %v521 = vmul.f32 %v489, -100.0
    %v522 = vmul.f32 %v490, -100.0
    %v523 = vmul.f32 %v491, -100.0
    %v524 = vmul.f32 %v492, -100.0
    %v525 = vmul.f32 %v493, -100.0
    %v526 = vmul.f32 %v494, -100.0
    %v527 = vmul.f32 %v495, -100.0
    %v528 = vmul.f32 %v496, -100.0
    %v529 = vmul.f32 %v497, -100.0
    %v530 = vmul.f32 %v498, -100.0
    %v531 = vmul.f32 %v499, -100.0
    %v532 = vmul.f32 %v500, -100.0
    %v533 = vmul.f32 %v501, -100.0
    %v534 = vmul.f32 %v502, -100.0
    %v535 = vmul.f32 %v503, -100.0
    %v536 = vmul.f32 %v504, -100.0
    %v537 = vmul.f32 %v505, -100.0
    %v538 = vmul.f32 %v506, -100.0
    %v539 = vmul.f32 %v507, -100.0
    %v540 = vmul.f32 %v508, -100.0
    %v541 = vmul.f32 %v509, -100.0
    %v542 = vmul.f32 %v510, -100.0
    %v543 = vlaneseq
    %v544 = vshrl.u32 %v543, 7
    %v545 = vsub.s32 0, %v544
    %v546 = vrot.slane %v306, %v545
    %v547 = vlaneseq
    %v548 = vshrl.u32 %v547, 7
    %v549 = vsub.s32 0, %v548
    %v550 = vrot.slane %v320, %v549
    %v551 = vlaneseq
    %v552 = vshrl.u32 %v551, 7
    %v553 = vsub.s32 0, %v552
    %v554 = vrot.slane %v328, %v553
    %v555 = vlaneseq
    %v556 = vshrl.u32 %v555, 7
    %v557 = vsub.s32 0, %v556
    %v558 = vrot.slane %v330, %v557
    %v559 = vlaneseq
    %v560 = vshrl.u32 %v559, 7
    %v561 = vsub.s32 0, %v560
    %v562 = vrot.slane %v313, %v561
    %v563 = vlaneseq
    %v564 = vshrl.u32 %v563, 7
    %v565 = vsub.s32 0, %v564
    %v566 = vrot.slane %v327, %v565
    %v567 = vlaneseq
    %v568 = vshrl.u32 %v567, 7
    %v569 = vsub.s32 0, %v568
    %v570 = vrot.slane %v329, %v569
    %v571 = vlaneseq
    %v572 = vshrl.u32 %v571, 7
    %v573 = vsub.s32 0, %v572
    %v574 = vrot.slane %v331, %v573
    %v575 = vlaneseq
    %v576 = vshrl.u32 %v575, 7
    %v577 = vsub.s32 0, %v576
    %v578 = vrot.slane %v355, %v577
    %v579 = vlaneseq
    %v580 = vshrl.u32 %v579, 7
    %v581 = vsub.s32 0, %v580
    %v582 = vrot.slane %v369, %v581
    %v583 = vlaneseq
    %v584 = vshrl.u32 %v583, 7
    %v585 = vsub.s32 0, %v584
    %v586 = vrot.slane %v377, %v585
    %v587 = vlaneseq
    %v588 = vshrl.u32 %v587, 7
    %v589 = vsub.s32 0, %v588
    %v590 = vrot.slane %v379, %v589
    %v591 = vlaneseq
    %v592 = vshrl.u32 %v591, 7
    %v593 = vsub.s32 0, %v592
    %v594 = vrot.slane %v362, %v593
    %v595 = vlaneseq
    %v596 = vshrl.u32 %v595, 7
    %v597 = vsub.s32 0, %v596
    %v598 = vrot.slane %v376, %v597
    %v599 = vlaneseq
    %v600 = vshrl.u32 %v599, 7
    %v601 = vsub.s32 0, %v600
    %v602 = vrot.slane %v378, %v601
    %v603 = vlaneseq
    %v604 = vshrl.u32 %v603, 7
    %v605 = vsub.s32 0, %v604
    %v606 = vrot.slane %v380, %v605
    %v607 = vlaneseq
    %v608 = vshrl.u32 %v607, 7
    %v609 = vsub.s32 0, %v608
    %v610 = vrot.slane %v404, %v609
    %v611 = vlaneseq
    %v612 = vshrl.u32 %v611, 7
    %v613 = vsub.s32 0, %v612
    %v614 = vrot.slane %v418, %v613
    %v615 = vlaneseq
    %v616 = vshrl.u32 %v615, 7
    %v617 = vsub.s32 0, %v616
    %v618 = vrot.slane %v426, %v617
    %v619 = vlaneseq
    %v620 = vshrl.u32 %v619, 7
    %v621 = vsub.s32 0, %v620
    %v622 = vrot.slane %v428, %v621
    %v623 = vlaneseq
    %v624 = vshrl.u32 %v623, 7
    %v625 = vsub.s32 0, %v624
    %v626 = vrot.slane %v411, %v625
    %v627 = vlaneseq
    %v628 = vshrl.u32 %v627, 7
    %v629 = vsub.s32 0, %v628
    %v630 = vrot.slane %v425, %v629
    %v631 = vlaneseq
    %v632 = vshrl.u32 %v631, 7
    %v633 = vsub.s32 0, %v632
    %v634 = vrot.slane %v427, %v633
    %v635 = vlaneseq
    %v636 = vshrl.u32 %v635, 7
    %v637 = vsub.s32 0, %v636
    %v638 = vrot.slane %v429, %v637
    %v639 = vlaneseq
    %v640 = vshrl.u32 %v639, 7
    %v641 = vsub.s32 0, %v640
    %v642 = vrot.slane %v453, %v641
    %v643 = vlaneseq
    %v644 = vshrl.u32 %v643, 7
    %v645 = vsub.s32 0, %v644
    %v646 = vrot.slane %v467, %v645
    %v647 = vlaneseq
    %v648 = vshrl.u32 %v647, 7
    %v649 = vsub.s32 0, %v648
    %v650 = vrot.slane %v475, %v649
    %v651 = vlaneseq
    %v652 = vshrl.u32 %v651, 7
    %v653 = vsub.s32 0, %v652
    %v654 = vrot.slane %v477, %v653
    %v655 = vlaneseq
    %v656 = vshrl.u32 %v655, 7
    %v657 = vsub.s32 0, %v656
    %v658 = vrot.slane %v460, %v657
    %v659 = vlaneseq
    %v660 = vshrl.u32 %v659, 7
    %v661 = vsub.s32 0, %v660
    %v662 = vrot.slane %v474, %v661
    %v663 = vlaneseq
    %v664 = vshrl.u32 %v663, 7
    %v665 = vsub.s32 0, %v664
    %v666 = vrot.slane %v476, %v665
    %v667 = vlaneseq
    %v668 = vshrl.u32 %v667, 7
    %v669 = vsub.s32 0, %v668
    %v670 = vrot.slane %v478, %v669
    %v703 = vadd.f32 %v546, %v511
    %v704 = vadd.f32 %v550, %v512
    %v705 = vadd.f32 %v554, %v513
    %v706 = vadd.f32 %v558, %v514
    %v707 = vadd.f32 %v562, %v515
    %v708 = vadd.f32 %v566, %v516
    %v709 = vadd.f32 %v570, %v517
    %v710 = vadd.f32 %v574, %v518
    %v711 = vadd.f32 %v578, %v519
    %v712 = vadd.f32 %v582, %v520
    %v713 = vadd.f32 %v586, %v521
    %v714 = vadd.f32 %v590, %v522
    %v715 = vadd.f32 %v594, %v523
    %v716 = vadd.f32 %v598, %v524
    %v717 = vadd.f32 %v602, %v525
    %v718 = vadd.f32 %v606, %v526
    %v719 = vadd.f32 %v610, %v527
    %v720 = vadd.f32 %v614, %v528
    %v721 = vadd.f32 %v618, %v529
    %v722 = vadd.f32 %v622, %v530
    %v723 = vadd.f32 %v626, %v531
    %v724 = vadd.f32 %v630, %v532
    %v725 = vadd.f32 %v634, %v533
    %v726 = vadd.f32 %v638, %v534
    %v727 = vadd.f32 %v642, %v535
    %v728 = vadd.f32 %v646, %v536
    %v729 = vadd.f32 %v650, %v537
    %v730 = vadd.f32 %v654, %v538
    %v731 = vadd.f32 %v658, %v539
    %v732 = vadd.f32 %v662, %v540
    %v733 = vadd.f32 %v666, %v541
    %v734 = vadd.f32 %v670, %v542
    %vm735 = vcmask 256000
    %v736 = vsel %vm735, %v703, -inf
    %v737 = vsel %vm735, %v704, -inf
    %v738 = vsel %vm735, %v705, -inf
    %v739 = vmax.f32 %v736, %v738
    %v740 = vsel %vm735, %v706, -inf
    %v741 = vmax.f32 %v737, %v740
    %v742 = vsel %vm735, %v707, -inf
    %v743 = vmax.f32 %v739, %v742
    %v744 = vsel %vm735, %v708, -inf
    %v745 = vmax.f32 %v741, %v744
    %v746 = vsel %vm735, %v709, -inf
    %v747 = vmax.f32 %v743, %v746
    %v748 = vsel %vm735, %v710, -inf
    %v749 = vmax.f32 %v745, %v748
    %v750 = vsel %vm735, %v711, -inf
    %v751 = vmax.f32 %v747, %v750
    %v752 = vsel %vm735, %v712, -inf
    %v753 = vmax.f32 %v749, %v752
    %v754 = vsel %vm735, %v713, -inf
    %v755 = vmax.f32 %v751, %v754
    %v756 = vsel %vm735, %v714, -inf
    %v757 = vmax.f32 %v753, %v756
    %v758 = vsel %vm735, %v715, -inf
    %v759 = vmax.f32 %v755, %v758
    %v760 = vsel %vm735, %v716, -inf
    %v761 = vmax.f32 %v757, %v760
    %v762 = vsel %vm735, %v717, -inf
    %v763 = vmax.f32 %v759, %v762
    %v764 = vsel %vm735, %v718, -inf
    %v765 = vmax.f32 %v761, %v764
    %v766 = vmax.f32 %v763, %v765
    %v767 = vsel %vm735, %v719, -inf
    %v768 = vsel %vm735, %v720, -inf
    %v769 = vsel %vm735, %v721, -inf
    %v770 = vmax.f32 %v767, %v769
    %v771 = vsel %vm735, %v722, -inf
    %v772 = vmax.f32 %v768, %v771
    %v773 = vsel %vm735, %v723, -inf
    %v774 = vmax.f32 %v770, %v773
    %v775 = vsel %vm735, %v724, -inf
    %v776 = vmax.f32 %v772, %v775
    %v777 = vsel %vm735, %v725, -inf
    %v778 = vmax.f32 %v774, %v777
    %v779 = vsel %vm735, %v726, -inf
    %v780 = vmax.f32 %v776, %v779
    %v781 = vsel %vm735, %v727, -inf
    %v782 = vmax.f32 %v778, %v781
    %v783 = vsel %vm735, %v728, -inf
    %v784 = vmax.f32 %v780, %v783
    %v785 = vsel %vm735, %v729, -inf
    %v786 = vmax.f32 %v782, %v785
    %v787 = vsel %vm735, %v730, -inf
    %v788 = vmax.f32 %v784, %v787
    %v789 = vsel %vm735, %v731, -inf
    %v790 = vmax.f32 %v786, %v789
    %v791 = vsel %vm735, %v732, -inf
    %v792 = vmax.f32 %v788, %v791
    %v793 = vsel %vm735, %v733, -inf
    %v794 = vmax.f32 %v790, %v793
    %v795 = vsel %vm735, %v734, -inf
    %v796 = vmax.f32 %v792, %v795
    %v797 = vmax.f32 %v794, %v796
    %798 = vst.msk [vmem:[%s2] sm:$0x7] %vm735, %v766
    %799 = vst.msk [vmem:[%s2 + $0x4] sm:$0x7] %vm735, %v797
    // Predicated region
    $region14: #{tpu_custom_call.1} parent=1 // pred_check
      _
    $region15: #{tpu_custom_call.1} parent=1 // pred_check_branch
      %801 = sbr.rel (0) target = $region17
    $region16: #{tpu_custom_call.1} parent=1 // pred_region
      _
    $region17: #{tpu_custom_call.1} parent=1 // pred_fallthru
      _
    // Predicated region
    $region18: #{tpu_custom_call.1} parent=1 // pred_check
      _
    $region19: #{tpu_custom_call.1} parent=1 // pred_check_branch
      %803 = sbr.rel (0) target = $region21
    $region20: #{tpu_custom_call.1} parent=1 // pred_region
      _
    $region21: #{tpu_custom_call.1} parent=1 // pred_fallthru
      _
    %804 = vsyncpa [#allocation3], 1

</llo_original>
